<compile_context>
chip_gen: v6e
topology: v6e:2x2x1
jax: 0.10.0
libtpu: 0.0.40
codegen_flags: <defaults>
</compile_context>

<pallas_src>
import math

import jax
import jax.numpy as jnp
from jax.experimental import pallas as pl
from jax.experimental.pallas import tpu as pltpu

_LANE = 512              # lane-dense last dim (multiple of 128 -> unmasked stores)
_MAX_TILE_ROWS = 512     # 512x512 f32 tile = 1 MiB/array; 8 arrays x 2 bufs = 16 MiB
_MIN_PALLAS_ELEMS = 4096 # below this, kernel launch + 8 tiny DMAs is pure overhead


def _modality_visual_kernel(avt_ref, av_ref, vt_ref, at_ref, a_ref, v_ref,
                            t_ref, o_ref):
    f32 = jnp.float32
    avt = avt_ref[...].astype(f32)
    av = av_ref[...].astype(f32)
    vt = vt_ref[...].astype(f32)
    at = at_ref[...].astype(f32)
    a = a_ref[...].astype(f32)
    v = v_ref[...].astype(f32)
    t = t_ref[...].astype(f32)
    # 1/3*(AVT-AT) + 1/6*(AV-A+VT-T) + 1/3*V == 1/6*(2*(AVT-AT+V) + (AV-A+VT-T))
    out = jnp.float32(1.0 / 6.0) * (2.0 * (avt - at + v) + (av - a + vt - t))
    o_ref[...] = out.astype(o_ref.dtype)


def _modality_visual_jnp(AVT, AV, VT, AT, A, V, T):
    """Plain-JAX reference / tiny-shape fallback (XLA fuses this for free)."""
    return (1.0 / 3.0) * (AVT - AT) + (1.0 / 6.0) * (AV - A + VT - T) + (1.0 / 3.0) * V


def modality_visual(AVT, AV, VT, AT, A, V, T, *, force_pallas=False):
    """Pallas wrapper reproducing Modality_Visual.forward semantics."""
    inputs = (AVT, AV, VT, AT, A, V, T)
    shape = AVT.shape
    dtype = AVT.dtype
    for x in inputs:
        assert x.shape == shape, "all modality logits must share a shape"
    n = math.prod(shape) if shape else 1

    # Size guard: for tiny logits the kernel would be 100% overhead.
    if not force_pallas and n < _MIN_PALLAS_ELEMS:
        return _modality_visual_jnp(*inputs)

    # Lane-dense layout plumbing: flatten, pad, reshape to (rows, 512).
    rows = pl.cdiv(n, _LANE)
    tile_rows = min(_MAX_TILE_ROWS, max(8, pl.cdiv(rows, 8) * 8))
    rows_padded = pl.cdiv(rows, tile_rows) * tile_rows
    padded_elems = rows_padded * _LANE

    def to_lane_dense(x):
        flat = x.reshape(-1)
        if padded_elems != n:
            flat = jnp.pad(flat, (0, padded_elems - n))
        return flat.reshape(rows_padded, _LANE)

    tiled_inputs = [to_lane_dense(x) for x in inputs]

    spec = pl.BlockSpec((tile_rows, _LANE), lambda i: (i, 0))
    out2d = pl.pallas_call(
        _modality_visual_kernel,
        out_shape=jax.ShapeDtypeStruct((rows_padded, _LANE), dtype),
        grid=(rows_padded // tile_rows,),
        in_specs=[spec] * 7,
        out_specs=spec,
        compiler_params=pltpu.CompilerParams(
            dimension_semantics=("parallel",),   # shards across v7x's 2 TCs
            vmem_limit_bytes=48 * 1024 * 1024,   # 16 MiB live; safe on v7x 64 MiB
        ),
    )(*tiled_inputs)

    out = out2d.reshape(-1)
    if padded_elems != n:
        out = out[:n]
    return out.reshape(shape)


if __name__ == "__main__":
    key = jax.random.PRNGKey(0)

    def make_inputs(shape, k):
        keys = jax.random.split(k, 7)
        return [jax.random.normal(kk, shape, dtype=jnp.float32) for kk in keys]

    # Case 1: realistic tiny logits (2, 32) -> wrapper falls back to fused XLA.
    ins_small = make_inputs((2, 32), jax.random.fold_in(key, 0))
    out_small = jax.block_until_ready(modality_visual(*ins_small))
    ref_small = _modality_visual_jnp(*ins_small)
    assert jnp.allclose(out_small, ref_small, atol=1e-5), "mismatch (tiny fallback)"

    # Case 2: lane-dense small shape exercising the Pallas kernel path.
    ins_dense = make_inputs((8, 512), jax.random.fold_in(key, 1))
    out_dense = jax.block_until_ready(
        modality_visual(*ins_dense, force_pallas=True))
    ref_dense = _modality_visual_jnp(*ins_dense)
    assert jnp.allclose(out_dense, ref_dense, atol=1e-5), "mismatch (lane-dense)"

    # Case 3: num_classes not a multiple of 128 -> padded/reshaped lane-dense path.
    ins_odd = make_inputs((16, 96), jax.random.fold_in(key, 2))
    out_odd = jax.block_until_ready(
        modality_visual(*ins_odd, force_pallas=True))
    ref_odd = _modality_visual_jnp(*ins_odd)
    assert jnp.allclose(out_odd, ref_odd, atol=1e-5), "mismatch (padded)"

    print("KERNEL_OK")
</pallas_src>

<mosaic_0001>
module attributes {stable_mosaic.version = 11 : i64} {
  func.func @_modality_visual_kernel(%arg0: i32, %arg1: memref<8x512xf32, #tpu.memory_space<vmem>>, %arg2: memref<8x512xf32, #tpu.memory_space<vmem>>, %arg3: memref<8x512xf32, #tpu.memory_space<vmem>>, %arg4: memref<8x512xf32, #tpu.memory_space<vmem>>, %arg5: memref<8x512xf32, #tpu.memory_space<vmem>>, %arg6: memref<8x512xf32, #tpu.memory_space<vmem>>, %arg7: memref<8x512xf32, #tpu.memory_space<vmem>>, %arg8: memref<8x512xf32, #tpu.memory_space<vmem>>) attributes {dimension_semantics = [#tpu.dimension_semantics<parallel>], iteration_bounds = array<i64: 1>, scalar_prefetch = 0 : i64, scratch_operands = 0 : i64, tpu.core_type = #tpu.core_type<tc>, window_params = [{transform_indices = @transform_0, window_bounds = array<i64: 8, 512>}, {transform_indices = @transform_1, window_bounds = array<i64: 8, 512>}, {transform_indices = @transform_2, window_bounds = array<i64: 8, 512>}, {transform_indices = @transform_3, window_bounds = array<i64: 8, 512>}, {transform_indices = @transform_4, window_bounds = array<i64: 8, 512>}, {transform_indices = @transform_5, window_bounds = array<i64: 8, 512>}, {transform_indices = @transform_6, window_bounds = array<i64: 8, 512>}, {transform_indices = @transform_7, window_bounds = array<i64: 8, 512>}]} {
    %c0 = arith.constant 0 : index
    %c0_0 = arith.constant 0 : index
    %0 = vector.load %arg1[%c0, %c0_0] : memref<8x512xf32, #tpu.memory_space<vmem>>, vector<8x512xf32>
    %c0_1 = arith.constant 0 : index
    %c0_2 = arith.constant 0 : index
    %1 = vector.load %arg2[%c0_1, %c0_2] : memref<8x512xf32, #tpu.memory_space<vmem>>, vector<8x512xf32>
    %c0_3 = arith.constant 0 : index
    %c0_4 = arith.constant 0 : index
    %2 = vector.load %arg3[%c0_3, %c0_4] : memref<8x512xf32, #tpu.memory_space<vmem>>, vector<8x512xf32>
    %c0_5 = arith.constant 0 : index
    %c0_6 = arith.constant 0 : index
    %3 = vector.load %arg4[%c0_5, %c0_6] : memref<8x512xf32, #tpu.memory_space<vmem>>, vector<8x512xf32>
    %c0_7 = arith.constant 0 : index
    %c0_8 = arith.constant 0 : index
    %4 = vector.load %arg5[%c0_7, %c0_8] : memref<8x512xf32, #tpu.memory_space<vmem>>, vector<8x512xf32>
    %c0_9 = arith.constant 0 : index
    %c0_10 = arith.constant 0 : index
    %5 = vector.load %arg6[%c0_9, %c0_10] : memref<8x512xf32, #tpu.memory_space<vmem>>, vector<8x512xf32>
    %c0_11 = arith.constant 0 : index
    %c0_12 = arith.constant 0 : index
    %6 = vector.load %arg7[%c0_11, %c0_12] : memref<8x512xf32, #tpu.memory_space<vmem>>, vector<8x512xf32>
    %7 = arith.subf %0, %3 : vector<8x512xf32>
    %8 = arith.addf %7, %5 : vector<8x512xf32>
    %cst = arith.constant 2.000000e+00 : f32
    %9 = vector.broadcast %cst : f32 to vector<8x512xf32>
    %10 = arith.mulf %9, %8 : vector<8x512xf32>
    %11 = arith.subf %1, %4 : vector<8x512xf32>
    %12 = arith.addf %11, %2 : vector<8x512xf32>
    %13 = arith.subf %12, %6 : vector<8x512xf32>
    %14 = arith.addf %10, %13 : vector<8x512xf32>
    %cst_13 = arith.constant 0.166666672 : f32
    %15 = vector.broadcast %cst_13 : f32 to vector<8x512xf32>
    %16 = arith.mulf %15, %14 : vector<8x512xf32>
    %c0_14 = arith.constant 0 : index
    %c0_15 = arith.constant 0 : index
    %17 = vector.load %arg8[%c0_14, %c0_15] : memref<8x512xf32, #tpu.memory_space<vmem>>, vector<8x512xf32>
    tpu.vector_store %arg8[%c0_14, %c0_15], %16 {strides = array<i32>} : memref<8x512xf32, #tpu.memory_space<vmem>>, vector<8x512xf32>,
    return
  }
  func.func @transform_0(%arg0: i32) -> (i32, i32) {
    %c0_i32 = arith.constant 0 : i32
    %c0_i32_0 = arith.constant 0 : i32
    return %arg0, %c0_i32 : i32, i32
  }
  func.func @transform_1(%arg0: i32) -> (i32, i32) {
    %c0_i32 = arith.constant 0 : i32
    %c0_i32_0 = arith.constant 0 : i32
    return %arg0, %c0_i32 : i32, i32
  }
  func.func @transform_2(%arg0: i32) -> (i32, i32) {
    %c0_i32 = arith.constant 0 : i32
    %c0_i32_0 = arith.constant 0 : i32
    return %arg0, %c0_i32 : i32, i32
  }
  func.func @transform_3(%arg0: i32) -> (i32, i32) {
    %c0_i32 = arith.constant 0 : i32
    %c0_i32_0 = arith.constant 0 : i32
    return %arg0, %c0_i32 : i32, i32
  }
  func.func @transform_4(%arg0: i32) -> (i32, i32) {
    %c0_i32 = arith.constant 0 : i32
    %c0_i32_0 = arith.constant 0 : i32
    return %arg0, %c0_i32 : i32, i32
  }
  func.func @transform_5(%arg0: i32) -> (i32, i32) {
    %c0_i32 = arith.constant 0 : i32
    %c0_i32_0 = arith.constant 0 : i32
    return %arg0, %c0_i32 : i32, i32
  }
  func.func @transform_6(%arg0: i32) -> (i32, i32) {
    %c0_i32 = arith.constant 0 : i32
    %c0_i32_0 = arith.constant 0 : i32
    return %arg0, %c0_i32 : i32, i32
  }
  func.func @transform_7(%arg0: i32) -> (i32, i32) {
    %c0_i32 = arith.constant 0 : i32
    %c0_i32_0 = arith.constant 0 : i32
    return %arg0, %c0_i32 : i32, i32
  }
}

</mosaic_0001>

<llo_original>
// kernel: tpu_custom_call.1
$region0: #{tpu_custom_call.1}
  #allocation0 [shape = 'u32[]', space=smem, size = 0x4, offset = 0x4, fixed_abs, tag = 'smem constant byte address 0x4 - core index']
  #allocation1 [shape = 'u32[144,128]{1,0:T(1,128)}', space=vmem, size = 0x12000, scoped, tag = 'internal scratch']
  %s0 = inlined_call_operand.hbm [shape: f32[8,512], index: 0, kind: input, shape index: {}]
  %s1 = inlined_call_operand.hbm [shape: f32[8,512], index: 1, kind: input, shape index: {}]
  %s2 = inlined_call_operand.hbm [shape: f32[8,512], index: 2, kind: input, shape index: {}]
  %s3 = inlined_call_operand.hbm [shape: f32[8,512], index: 3, kind: input, shape index: {}]
  %s4 = inlined_call_operand.hbm [shape: f32[8,512], index: 4, kind: input, shape index: {}]
  %s5 = inlined_call_operand.hbm [shape: f32[8,512], index: 5, kind: input, shape index: {}]
  %s6 = inlined_call_operand.hbm [shape: f32[8,512], index: 6, kind: input, shape index: {}]
  %s7 = inlined_call_operand.hbm [shape: f32[8,512], index: 7, kind: output, shape index: {}]
  %s8 = sld [smem:[#allocation0]]
  $region66: #{tpu_custom_call.1} parent=0
    _
  %s10 = ssub.s32 1, %s8
  %s11 = scalar_select 0, %s10, %s8
  $region1: #{tpu_custom_call.1} parent=0
    #allocation2 [shape = 'u8[16384]{0}', space=vmem, size = 0x4000, scoped, tag = 'input window, operand 0, single buffered']
    #allocation3 [shape = 's32[1]{0}', space=sflag, size = 0x4, scoped, tag = 'scoped memory for tpu_custom_call.1']
    #allocation4 [shape = 's32[1]{0}', space=sflag, size = 0x4, scoped, tag = 'scoped memory for tpu_custom_call.1']
    #allocation5 [shape = 'u8[16384]{0}', space=vmem, size = 0x4000, scoped, tag = 'input window, operand 1, single buffered']
    #allocation6 [shape = 's32[1]{0}', space=sflag, size = 0x4, scoped, tag = 'scoped memory for tpu_custom_call.1']
    #allocation7 [shape = 'u8[16384]{0}', space=vmem, size = 0x4000, scoped, tag = 'input window, operand 2, single buffered']
    #allocation8 [shape = 'u8[16384]{0}', space=vmem, size = 0x4000, scoped, tag = 'input window, operand 3, single buffered']
    #allocation9 [shape = 's32[1]{0}', space=sflag, size = 0x4, scoped, tag = 'scoped memory for tpu_custom_call.1']
    #allocation10 [shape = 'u8[16384]{0}', space=vmem, size = 0x4000, scoped, tag = 'input window, operand 4, single buffered']
    #allocation11 [shape = 'u8[16384]{0}', space=vmem, size = 0x4000, scoped, tag = 'input window, operand 5, single buffered']
    #allocation12 [shape = 's32[1]{0}', space=sflag, size = 0x4, scoped, tag = 'scoped memory for tpu_custom_call.1']
    #allocation13 [shape = 'u8[16384]{0}', space=vmem, size = 0x4000, scoped, tag = 'input window, operand 6, single buffered']
    #allocation14 [shape = 'u8[16384]{0}', space=vmem, size = 0x4000, scoped, tag = 'output window, operand 0, single buffered']
    %12 = vsyncpa [#allocation3], 0
    %13 = vsyncpa [#allocation6], 0
    %14 = vsyncpa [#allocation9], 0
    %15 = vsyncpa [#allocation12], 0
    %16 = vsyncpa [#allocation4], 0
    // Predicated region
    $region2: #{tpu_custom_call.1} parent=1 // pred_check
      _
    $region3: #{tpu_custom_call.1} parent=1 // pred_check_branch
      %18 = sbr.rel (0) target = $region5
    $region4: #{tpu_custom_call.1} parent=1 // pred_region
      %s20 = ssub.s32 512, 512
      %21 = vsyncadd [#allocation3], %s20
      %s23 = sshll.u32 [#allocation2], 4
      %s24 = int_to_ptr.vmem [resolvable:$true] %s23
      %26 = dma.hbm_to_vmem [thread:$0]  %s0, 512, %s24, [#allocation3]
    $region5: #{tpu_custom_call.1} parent=1 // pred_fallthru
      _
    // Predicated region
    $region6: #{tpu_custom_call.1} parent=1 // pred_check
      _
    $region7: #{tpu_custom_call.1} parent=1 // pred_check_branch
      %28 = sbr.rel (0) target = $region9
    $region8: #{tpu_custom_call.1} parent=1 // pred_region
      %s30 = ssub.s32 512, 512
      %31 = vsyncadd [#allocation6], %s30
      %s33 = sshll.u32 [#allocation5], 4
      %s34 = int_to_ptr.vmem [resolvable:$true] %s33
      %36 = dma.hbm_to_vmem [thread:$0]  %s1, 512, %s34, [#allocation6]
    $region9: #{tpu_custom_call.1} parent=1 // pred_fallthru
      _
    // Predicated region
    $region10: #{tpu_custom_call.1} parent=1 // pred_check
      _
    $region11: #{tpu_custom_call.1} parent=1 // pred_check_branch
      %38 = sbr.rel (0) target = $region13
    $region12: #{tpu_custom_call.1} parent=1 // pred_region
      %s40 = ssub.s32 512, 512
      %41 = vsyncadd [#allocation6], %s40
      %s43 = sshll.u32 [#allocation7], 4
      %s44 = int_to_ptr.vmem [resolvable:$true] %s43
      %46 = dma.hbm_to_vmem [thread:$0]  %s2, 512, %s44, [#allocation6]
    $region13: #{tpu_custom_call.1} parent=1 // pred_fallthru
      _
    // Predicated region
    $region14: #{tpu_custom_call.1} parent=1 // pred_check
      _
    $region15: #{tpu_custom_call.1} parent=1 // pred_check_branch
      %48 = sbr.rel (0) target = $region17
    $region16: #{tpu_custom_call.1} parent=1 // pred_region
      %s50 = ssub.s32 512, 512
      %51 = vsyncadd [#allocation9], %s50
      %s53 = sshll.u32 [#allocation8], 4
      %s54 = int_to_ptr.vmem [resolvable:$true] %s53
      %56 = dma.hbm_to_vmem [thread:$0]  %s3, 512, %s54, [#allocation9]
    $region17: #{tpu_custom_call.1} parent=1 // pred_fallthru
      _
    // Predicated region
    $region18: #{tpu_custom_call.1} parent=1 // pred_check
      _
    $region19: #{tpu_custom_call.1} parent=1 // pred_check_branch
      %58 = sbr.rel (0) target = $region21
    $region20: #{tpu_custom_call.1} parent=1 // pred_region
      %s60 = ssub.s32 512, 512
      %61 = vsyncadd [#allocation9], %s60
      %s63 = sshll.u32 [#allocation10], 4
      %s64 = int_to_ptr.vmem [resolvable:$true] %s63
      %66 = dma.hbm_to_vmem [thread:$0]  %s4, 512, %s64, [#allocation9]
    $region21: #{tpu_custom_call.1} parent=1 // pred_fallthru
      _
    // Predicated region
    $region22: #{tpu_custom_call.1} parent=1 // pred_check
      _
    $region23: #{tpu_custom_call.1} parent=1 // pred_check_branch
      %68 = sbr.rel (0) target = $region25
    $region24: #{tpu_custom_call.1} parent=1 // pred_region
      %s70 = ssub.s32 512, 512
      %71 = vsyncadd [#allocation12], %s70
      %s73 = sshll.u32 [#allocation11], 4
      %s74 = int_to_ptr.vmem [resolvable:$true] %s73
      %76 = dma.hbm_to_vmem [thread:$0]  %s5, 512, %s74, [#allocation12]
    $region25: #{tpu_custom_call.1} parent=1 // pred_fallthru
      _
    // Predicated region
    $region26: #{tpu_custom_call.1} parent=1 // pred_check
      _
    $region27: #{tpu_custom_call.1} parent=1 // pred_check_branch
      %78 = sbr.rel (0) target = $region29
    $region28: #{tpu_custom_call.1} parent=1 // pred_region
      %s80 = ssub.s32 512, 512
      %81 = vsyncadd [#allocation12], %s80
      %s83 = sshll.u32 [#allocation13], 4
      %s84 = int_to_ptr.vmem [resolvable:$true] %s83
      %86 = dma.hbm_to_vmem [thread:$0]  %s6, 512, %s84, [#allocation12]
    $region29: #{tpu_custom_call.1} parent=1 // pred_fallthru
      _
    // Predicated region
    $region30: #{tpu_custom_call.1} parent=1 // pred_check
      _
    $region31: #{tpu_custom_call.1} parent=1 // pred_check_branch
      %88 = sbr.rel (0) target = $region33
    $region32: #{tpu_custom_call.1} parent=1 // pred_region
      %89 = dma.done [#allocation3], 512
    $region33: #{tpu_custom_call.1} parent=1 // pred_fallthru
      _
    // Predicated region
    $region34: #{tpu_custom_call.1} parent=1 // pred_check
      _
    $region35: #{tpu_custom_call.1} parent=1 // pred_check_branch
      %91 = sbr.rel (0) target = $region37
    $region36: #{tpu_custom_call.1} parent=1 // pred_region
      %92 = dma.done [#allocation6], 512
    $region37: #{tpu_custom_call.1} parent=1 // pred_fallthru
      _
    // Predicated region
    $region38: #{tpu_custom_call.1} parent=1 // pred_check
      _
    $region39: #{tpu_custom_call.1} parent=1 // pred_check_branch
      %94 = sbr.rel (0) target = $region41
    $region40: #{tpu_custom_call.1} parent=1 // pred_region
      %95 = dma.done [#allocation6], 512
    $region41: #{tpu_custom_call.1} parent=1 // pred_fallthru
      _
    // Predicated region
    $region42: #{tpu_custom_call.1} parent=1 // pred_check
      _
    $region43: #{tpu_custom_call.1} parent=1 // pred_check_branch
      %97 = sbr.rel (0) target = $region45
    $region44: #{tpu_custom_call.1} parent=1 // pred_region
      %98 = dma.done [#allocation9], 512
    $region45: #{tpu_custom_call.1} parent=1 // pred_fallthru
      _
    // Predicated region
    $region46: #{tpu_custom_call.1} parent=1 // pred_check
      _
    $region47: #{tpu_custom_call.1} parent=1 // pred_check_branch
      %100 = sbr.rel (0) target = $region49
    $region48: #{tpu_custom_call.1} parent=1 // pred_region
      %101 = dma.done [#allocation9], 512
    $region49: #{tpu_custom_call.1} parent=1 // pred_fallthru
      _
    // Predicated region
    $region50: #{tpu_custom_call.1} parent=1 // pred_check
      _
    $region51: #{tpu_custom_call.1} parent=1 // pred_check_branch
      %103 = sbr.rel (0) target = $region53
    $region52: #{tpu_custom_call.1} parent=1 // pred_region
      %104 = dma.done [#allocation12], 512
    $region53: #{tpu_custom_call.1} parent=1 // pred_fallthru
      _
    // Predicated region
    $region54: #{tpu_custom_call.1} parent=1 // pred_check
      _
    $region55: #{tpu_custom_call.1} parent=1 // pred_check_branch
      %106 = sbr.rel (0) target = $region57
    $region56: #{tpu_custom_call.1} parent=1 // pred_region
      %107 = dma.done [#allocation12], 512
    $region57: #{tpu_custom_call.1} parent=1 // pred_fallthru
      _
    %v108 = vld [vmem:[#allocation2] sm:$0xff]
    %v109 = vld [vmem:[#allocation2 + $0x8] sm:$0xff]
    %v110 = vld [vmem:[#allocation2 + $0x10] sm:$0xff]
    %v111 = vld [vmem:[#allocation2 + $0x18] sm:$0xff]
    %v112 = vld [vmem:[#allocation5] sm:$0xff]
    %v113 = vld [vmem:[#allocation5 + $0x8] sm:$0xff]
    %v114 = vld [vmem:[#allocation5 + $0x10] sm:$0xff]
    %v115 = vld [vmem:[#allocation5 + $0x18] sm:$0xff]
    %v116 = vld [vmem:[#allocation7] sm:$0xff]
    %v117 = vld [vmem:[#allocation7 + $0x8] sm:$0xff]
    %v118 = vld [vmem:[#allocation7 + $0x10] sm:$0xff]
    %v119 = vld [vmem:[#allocation7 + $0x18] sm:$0xff]
    %v120 = vld [vmem:[#allocation8] sm:$0xff]
    %v121 = vld [vmem:[#allocation8 + $0x8] sm:$0xff]
    %v122 = vld [vmem:[#allocation8 + $0x10] sm:$0xff]
    %v123 = vld [vmem:[#allocation8 + $0x18] sm:$0xff]
    %v124 = vld [vmem:[#allocation10] sm:$0xff]
    %v125 = vld [vmem:[#allocation10 + $0x8] sm:$0xff]
    %v126 = vld [vmem:[#allocation10 + $0x10] sm:$0xff]
    %v127 = vld [vmem:[#allocation10 + $0x18] sm:$0xff]
    %v128 = vld [vmem:[#allocation11] sm:$0xff]
    %v129 = vld [vmem:[#allocation11 + $0x8] sm:$0xff]
    %v130 = vld [vmem:[#allocation11 + $0x10] sm:$0xff]
    %v131 = vld [vmem:[#allocation11 + $0x18] sm:$0xff]
    %v132 = vld [vmem:[#allocation13] sm:$0xff]
    %v133 = vld [vmem:[#allocation13 + $0x8] sm:$0xff]
    %v134 = vld [vmem:[#allocation13 + $0x10] sm:$0xff]
    %v135 = vld [vmem:[#allocation13 + $0x18] sm:$0xff]
    %v136 = vsub.f32 %v108, %v120
    %v137 = vsub.f32 %v109, %v121
    %v138 = vsub.f32 %v110, %v122
    %v139 = vsub.f32 %v111, %v123
    %v140 = vadd.f32 %v136, %v128
    %v141 = vadd.f32 %v137, %v129
    %v142 = vadd.f32 %v138, %v130
    %v143 = vadd.f32 %v139, %v131
    %v144 = vmul.f32 %v140, 2.0
    %v145 = vmul.f32 %v141, 2.0
    %v146 = vmul.f32 %v142, 2.0
    %v147 = vmul.f32 %v143, 2.0
    %v148 = vsub.f32 %v112, %v124
    %v149 = vsub.f32 %v113, %v125
    %v150 = vsub.f32 %v114, %v126
    %v151 = vsub.f32 %v115, %v127
    %v152 = vadd.f32 %v148, %v116
    %v153 = vadd.f32 %v149, %v117
    %v154 = vadd.f32 %v150, %v118
    %v155 = vadd.f32 %v151, %v119
    %v156 = vsub.f32 %v152, %v132
    %v157 = vsub.f32 %v153, %v133
    %v158 = vsub.f32 %v154, %v134
    %v159 = vsub.f32 %v155, %v135
    %v160 = vadd.f32 %v144, %v156
    %v161 = vadd.f32 %v145, %v157
    %v162 = vadd.f32 %v146, %v158
    %v163 = vadd.f32 %v147, %v159
    %v164 = vmul.f32 %v160, 0.16666667
    %v165 = vmul.f32 %v161, 0.16666667
    %v166 = vmul.f32 %v162, 0.16666667
    %v167 = vmul.f32 %v163, 0.16666667
    %168 = vst [vmem:[#allocation14] sm:$0xff] %v164
    %169 = vst [vmem:[#allocation14 + $0x8] sm:$0xff] %v165
    %170 = vst [vmem:[#allocation14 + $0x10] sm:$0xff] %v166
    %171 = vst [vmem:[#allocation14 + $0x18] sm:$0xff] %v167
    // Predicated region
    $region58: #{tpu_custom_call.1} parent=1 // pred_check
      _
    $region59: #{tpu_custom_call.1} parent=1 // pred_check_branch
      %173 = sbr.rel (0) target = $region61
    $region60: #{tpu_custom_call.1} parent=1 // pred_region
      %s175 = ssub.s32 512, 512
      %176 = vsyncadd [#allocation4], %s175
      %s178 = sshll.u32 [#allocation14], 4
      %s179 = int_to_ptr.vmem [resolvable:$true] %s178
      %181 = dma.vmem_to_hbm [thread:$0]  %s179, 512, %s7, [#allocation4]
    $region61: #{tpu_custom_call.1} parent=1 // pred_fallthru
      _
    // Predicated region
    $region62: #{tpu_custom_call.1} parent=1 // pred_check
      _
    $region63: #{tpu_custom_call.1} parent=1 // pred_check_branch
      %183 = sbr.rel (0) target = $region65
    $region64: #{tpu_custom_call.1} parent=1 // pred_region
      %184 = dma.done [#allocation4], 512
    $region65: #{tpu_custom_call.1} parent=1 // pred_fallthru
      _
    %185 = vsyncpa [#allocation3], 1
    %186 = vsyncpa [#allocation6], 1
    %187 = vsyncpa [#allocation9], 1
    %188 = vsyncpa [#allocation12], 1
    %189 = vsyncpa [#allocation4], 1

</llo_original>
